<compile_context>
chip_gen: v7x
topology: tpu7x:2x2x1
jax: 0.10.0
libtpu: 0.0.40
codegen_flags: <defaults>
</compile_context>

<pallas_src>
import functools

import jax
import jax.numpy as jnp
from jax.experimental import pallas as pl
from jax.experimental.pallas import tpu as pltpu


_A = -0.75  # PyTorch bicubic convolution constant


def _cubic1(t):
    # |t| in [0, 1):  ((A+2)*t - (A+3)) * t * t + 1
    return ((_A + 2.0) * t - (_A + 3.0)) * t * t + 1.0


def _cubic2(t):
    # |t| in [1, 2):  ((A*t - 5A)*t + 8A)*t - 4A
    return ((_A * t - 5.0 * _A) * t + 8.0 * _A) * t - 4.0 * _A


def _weight_dtype():
    """bf16 outer product on chips with a bf16 VPU (v6e/v7x); f32 on v5e & older."""
    try:
        kind = jax.devices()[0].device_kind.lower()
    except Exception:
        return jnp.float32
    return jnp.bfloat16 if ("v6" in kind or "v7" in kind) else jnp.float32


def _interp_kernel(pos_ref, x_hbm, out_ref, x_vmem, copy_sem, *,
                   Hn, Wn, Hin, Win, Win_p, out_nc, w_dtype):
    """One (batch, N-tile) grid step.

    pos_ref: [1, 2, tN]     row 0 = x coords, row 1 = y coords (lane-major points)
    x_hbm:   [B, C, HW]     raw HBM ref (HW = Hin*Win_p), flattened bf16 features
    out_ref: [1, C, tN]     (C < 128)  or  [1, tN, C] (C >= 128), lane-dense
    x_vmem:  [C, HW]        persistent single-buffered bf16 feature scratch
    copy_sem: DMA semaphore for the per-batch feature copy
    """
    b = pl.program_id(0)
    j = pl.program_id(1)

    # Single-buffered, grid-invariant feature block: DMA once per batch.
    @pl.when(j == 0)
    def _():
        cp = pltpu.make_async_copy(x_hbm.at[b], x_vmem, copy_sem)
        cp.start()
        cp.wait()

    HW = x_vmem.shape[1]
    tN = pos_ref.shape[2]

    pos = pos_ref[0].astype(jnp.float32)          # [2, tN]
    px = pos[0:1, :]                              # [1, tN]
    py = pos[1:2, :]                              # [1, tN]

    # normgrid: pixel coords -> [-1, 1] in the (H, W) reference frame.
    # (Precondition: H > 1 and W > 1, as in the PyTorch module.)
    gx = 2.0 * px / (Wn - 1.0) - 1.0
    gy = 2.0 * py / (Hn - 1.0) - 1.0

    # grid_sample unnormalize (align_corners=False) against feature-map dims.
    ix = ((gx + 1.0) * Win - 1.0) * 0.5           # [1, tN]
    iy = ((gy + 1.0) * Hin - 1.0) * 0.5           # [1, tN]

    def keys_weights(size, coord):
        # Direct Keys-cubic evaluation on the tap distance. Identical to the
        # 4-tap one-hot formulation (cubic1(1)=cubic2(1)=cubic2(2)=0), but
        # ~2 polynomial evals + 2 selects per row instead of 4 compare+FMA.
        rows = jax.lax.broadcasted_iota(jnp.int32, (size, tN), 0).astype(jnp.float32)
        d = jnp.abs(rows - coord)                 # [size, tN]
        w = jnp.where(d < 1.0, _cubic1(d), jnp.where(d < 2.0, _cubic2(d), 0.0))
        return w.astype(w_dtype)

    wy = keys_weights(Hin, iy)                    # [Hin,  tN]
    wx = keys_weights(Win_p, ix)                  # [Win_p, tN]

    # Outer product -> transposed dense weight matrix W^T[hw, n]. Win_p is a
    # sublane multiple, so the reshape is a free relayout. Built directly in
    # the MXU operand dtype on bf16-VPU chips (no full-matrix cast pass).
    wmat_t = (wy[:, None, :] * wx[None, :, :]).reshape(HW, tN)
    wmat_b = wmat_t.astype(jnp.bfloat16)          # no-op when w_dtype == bf16

    x_b = x_vmem[...]                             # [C, HW] bf16

    if out_nc:
        # out[n, c] = sum_hw W^T[hw, n] * x[c, hw]   -> [tN, C] (lane-dense, C>=128)
        out = jax.lax.dot_general(
            wmat_b, x_b, (((0,), (1,)), ((), ())),
            preferred_element_type=jnp.float32)
    else:
        # out[c, n] = sum_hw x[c, hw] * W^T[hw, n]   -> [C, tN] (lane-dense)
        out = jax.lax.dot_general(
            x_b, wmat_b, (((1,), (0,)), ((), ())),
            preferred_element_type=jnp.float32)

    out_ref[0] = out.astype(out_ref.dtype)


def interpolate_sparse2d(x, pos, H, W):
    """Pallas equivalent of InterpolateSparse2d(mode='bicubic').forward(x, pos, H, W)."""
    B, C, Hin, Win = x.shape
    _, N, _ = pos.shape
    out_dtype = x.dtype

    # MXU-sized N tile (multiple of 128, up to 512 for fewer grid steps).
    if N >= 512:
        tN = 512
    elif N >= 256:
        tN = 256
    else:
        tN = 128
    N_pad = pl.cdiv(N, tN) * tN

    # Pad Win up to a sublane multiple so the in-kernel (Hin, Win)->HW reshape
    # of the weight outer product is a free relayout. Padded columns hold zero
    # feature data -> exactly grid_sample zeros-padding semantics.
    Win_p = ((Win + 7) // 8) * 8
    if Win_p != Win:
        x = jnp.pad(x, ((0, 0), (0, 0), (0, 0), (0, Win_p - Win)))
    HW = Hin * Win_p

    # Lane-major positions [B, 2, N_pad]; padded points sample at (0, 0) and
    # the resulting rows are sliced off after the call.
    pos_t = jnp.transpose(pos.astype(jnp.float32), (0, 2, 1))
    pos_t = jnp.pad(pos_t, ((0, 0), (0, 0), (0, N_pad - N)))

    # bf16 features cast once in the wrapper: halves HBM->VMEM bytes and VMEM
    # residency; the MXU sees bf16 either way.
    x_flat = x.reshape(B, C, HW).astype(jnp.bfloat16)

    out_nc = C >= 128          # write [B, N_pad, C] directly when lane-dense
    w_dtype = _weight_dtype()

    kernel = functools.partial(
        _interp_kernel, Hn=float(H), Wn=float(W), Hin=Hin, Win=Win,
        Win_p=Win_p, out_nc=out_nc, w_dtype=w_dtype)

    out_itemsize = jnp.dtype(out_dtype).itemsize
    w_itemsize = jnp.dtype(w_dtype).itemsize

    # VMEM budget from the actual buffers (+2x headroom), capped at 48 MiB so
    # it stays well under v7x's 64 MiB per-TC VMEM.
    need = (2 * 2 * tN * 4                      # pos block (double-buffered)
            + C * HW * 2                        # single-buffered bf16 features
            + 2 * C * tN * out_itemsize         # output block (double-buffered)
            + (Hin + Win_p) * tN * 4            # wy / wx factors
            + 3 * HW * tN * w_itemsize)         # dense W^T + relayout headroom
    vmem_limit = int(min(max(2 * need, 16 * 1024 * 1024), 48 * 1024 * 1024))

    cost = pl.CostEstimate(
        flops=int(2 * B * C * HW * N_pad),
        transcendentals=0,
        bytes_accessed=int(B * C * HW * 2 + B * 2 * N_pad * 4
                           + B * C * N_pad * out_itemsize))

    if out_nc:
        out_shape = jax.ShapeDtypeStruct((B, N_pad, C), out_dtype)
        out_spec = pl.BlockSpec((1, tN, C), lambda b, j: (b, j, 0))
    else:
        out_shape = jax.ShapeDtypeStruct((B, C, N_pad), out_dtype)
        out_spec = pl.BlockSpec((1, C, tN), lambda b, j: (b, 0, j))

    out_raw = pl.pallas_call(
        kernel,
        out_shape=out_shape,
        grid_spec=pltpu.PrefetchScalarGridSpec(
            num_scalar_prefetch=0,
            grid=(B, N_pad // tN),
            in_specs=[
                pl.BlockSpec((1, 2, tN), lambda b, j: (b, 0, j)),
                pl.BlockSpec(memory_space=pl.ANY),   # raw HBM; manual per-batch copy
            ],
            out_specs=out_spec,
            scratch_shapes=[
                pltpu.VMEM((C, HW), jnp.bfloat16),   # single-buffered feature block
                pltpu.SemaphoreType.DMA,
            ]),
        compiler_params=pltpu.CompilerParams(
            # j must stay "arbitrary": the per-batch feature copy is gated on
            # j == 0 and the feature scratch persists across the j loop.
            dimension_semantics=("parallel", "arbitrary"),
            vmem_limit_bytes=vmem_limit),
        cost_estimate=cost,
    )(pos_t, x_flat)

    if out_nc:
        return out_raw[:, :N, :]
    # Lane-dense kernel output [B, C, N_pad] -> spec layout [B, N, C].
    return jnp.transpose(out_raw, (0, 2, 1))[:, :N, :]


def _reference(x, pos, H, W):
    """Pure-JAX reference (bicubic, align_corners=False, zeros padding)."""
    B, C, Hin, Win = x.shape
    px = pos[..., 0].astype(jnp.float32)
    py = pos[..., 1].astype(jnp.float32)
    gx = 2.0 * px / (W - 1.0) - 1.0
    gy = 2.0 * py / (H - 1.0) - 1.0
    ix = ((gx + 1.0) * Win - 1.0) * 0.5
    iy = ((gy + 1.0) * Hin - 1.0) * 0.5
    ix0 = jnp.floor(ix)
    iy0 = jnp.floor(iy)
    tx, ty = ix - ix0, iy - iy0
    ix0i, iy0i = ix0.astype(jnp.int32), iy0.astype(jnp.int32)
    cx = (_cubic2(tx + 1.0), _cubic1(tx), _cubic1(1.0 - tx), _cubic2(2.0 - tx))
    cy = (_cubic2(ty + 1.0), _cubic1(ty), _cubic1(1.0 - ty), _cubic2(2.0 - ty))
    out = jnp.zeros((B, pos.shape[1], C), jnp.float32)
    xf = x.astype(jnp.float32)
    for i in range(4):
        yidx = iy0i - 1 + i
        y_ok = (yidx >= 0) & (yidx < Hin)
        yc = jnp.clip(yidx, 0, Hin - 1)
        for j in range(4):
            xidx = ix0i - 1 + j
            x_ok = (xidx >= 0) & (xidx < Win)
            xc = jnp.clip(xidx, 0, Win - 1)
            vals = jax.vmap(lambda xb, yb, xbi: xb[:, yb, xbi].T)(xf, yc, xc)
            w = (cy[i] * cx[j] * (y_ok & x_ok).astype(jnp.float32))[..., None]
            out = out + w * vals
    return out.astype(x.dtype)


if __name__ == "__main__":
    key = jax.random.PRNGKey(0)
    k1, k2, k3, k4 = jax.random.split(key, 4)

    # Path 1: C < 128 -> lane-dense [B, C, tN] kernel output, wrapper transpose.
    B, C, Hin, Win = 2, 32, 16, 16
    N = 8
    H, W = Hin, Win  # reference frame for normalization
    x = jax.random.normal(k1, (B, C, Hin, Win), dtype=jnp.float32)
    pos = jax.random.uniform(k2, (B, N, 2), dtype=jnp.float32) * jnp.array(
        [W - 1.0, H - 1.0], dtype=jnp.float32)
    out = jax.block_until_ready(interpolate_sparse2d(x, pos, H, W))
    ref = _reference(x, pos, H, W)
    assert out.shape == (B, N, C), out.shape
    # bf16 MXU operands -> relaxed tolerance vs the f32 reference.
    assert jnp.allclose(out, ref, atol=5e-2, rtol=5e-2), "mismatch (C<128 path)"

    # Path 2: C >= 128 -> direct [B, N_pad, C] output; Win=12 exercises the
    # sublane-padding path (Win_p = 16).
    B2, C2, Hin2, Win2, N2 = 1, 128, 12, 12, 8
    H2, W2 = Hin2, Win2
    x2 = jax.random.normal(k3, (B2, C2, Hin2, Win2), dtype=jnp.float32)
    pos2 = jax.random.uniform(k4, (B2, N2, 2), dtype=jnp.float32) * jnp.array(
        [W2 - 1.0, H2 - 1.0], dtype=jnp.float32)
    out2 = jax.block_until_ready(interpolate_sparse2d(x2, pos2, H2, W2))
    ref2 = _reference(x2, pos2, H2, W2)
    assert out2.shape == (B2, N2, C2), out2.shape
    assert jnp.allclose(out2, ref2, atol=5e-2, rtol=5e-2), "mismatch (C>=128 path)"

    print("KERNEL_OK")
</pallas_src>

<mosaic_0001>
module attributes {stable_mosaic.version = 11 : i64} {
  func.func @_interp_kernel(%arg0: i32, %arg1: i32, %arg2: memref<1x2x128xf32, #tpu.memory_space<vmem>>, %arg3: memref<2x32x256xbf16, #tpu.memory_space<any>>, %arg4: memref<1x32x128xf32, #tpu.memory_space<vmem>>, %arg5: memref<32x256xbf16, #tpu.memory_space<vmem>>, %arg6: memref<!tpu.dma_semaphore, #tpu.memory_space<semaphore_mem>>) attributes {dimension_semantics = [#tpu.dimension_semantics<parallel>, #tpu.dimension_semantics<arbitrary>], iteration_bounds = array<i64: 2, 1>, scalar_prefetch = 0 : i64, scratch_operands = 2 : i64, tpu.core_type = #tpu.core_type<tc>, window_params = [{transform_indices = @transform_0, window_bounds = array<i64: 1, 2, 128>}, {}, {transform_indices = @transform_2, window_bounds = array<i64: 1, 32, 128>}]} {
    %c0_i32 = arith.constant 0 : i32
    %0 = arith.cmpi eq, %arg1, %c0_i32 : i32
    %1 = arith.extui %0 : i1 to i32
    %c0_i32_0 = arith.constant 0 : i32
    %2 = arith.cmpi ne, %1, %c0_i32_0 : i32
    scf.if %2 {
      %c0_i32_42 = arith.constant 0 : i32
      %c0_i32_43 = arith.constant 0 : i32
      %107 = tpu.memref_slice %arg3[%arg0, %c0_i32_42, %c0_i32_43] : memref<2x32x256xbf16, #tpu.memory_space<any>> -> memref<1x32x256xbf16, #tpu.memory_space<any>>
      %108 = tpu.memref_squeeze %107 : memref<1x32x256xbf16, #tpu.memory_space<any>> -> memref<32x256xbf16, #tpu.memory_space<any>>
      tpu.enqueue_dma source(%108 : memref<32x256xbf16, #tpu.memory_space<any>>) target(%arg5 : memref<32x256xbf16, #tpu.memory_space<vmem>>) target_semaphore(%arg6 : memref<!tpu.dma_semaphore, #tpu.memory_space<semaphore_mem>>)
      %c0_i32_44 = arith.constant 0 : i32
      %c0_i32_45 = arith.constant 0 : i32
      %109 = tpu.memref_slice %arg3[%arg0, %c0_i32_44, %c0_i32_45] : memref<2x32x256xbf16, #tpu.memory_space<any>> -> memref<1x32x256xbf16, #tpu.memory_space<any>>
      %110 = tpu.memref_squeeze %109 : memref<1x32x256xbf16, #tpu.memory_space<any>> -> memref<32x256xbf16, #tpu.memory_space<any>>
      tpu.wait_dma2 semaphore(%arg6 : memref<!tpu.dma_semaphore, #tpu.memory_space<semaphore_mem>>) src(%110 : memref<32x256xbf16, #tpu.memory_space<any>>) dst(%arg5 : memref<32x256xbf16, #tpu.memory_space<vmem>>)
    } else {
    }
    %c0 = arith.constant 0 : index
    %c0_1 = arith.constant 0 : index
    %c0_2 = arith.constant 0 : index
    %3 = vector.load %arg2[%c0, %c0_1, %c0_2] : memref<1x2x128xf32, #tpu.memory_space<vmem>>, vector<1x2x128xf32>
    %4 = vector.shape_cast %3 : vector<1x2x128xf32> to vector<2x128xf32>
    %5 = vector.extract_strided_slice %4 {offsets = [0, 0], sizes = [1, 128], strides = [1, 1]} : vector<2x128xf32> to vector<1x128xf32>
    %6 = vector.extract_strided_slice %4 {offsets = [1, 0], sizes = [1, 128], strides = [1, 1]} : vector<2x128xf32> to vector<1x128xf32>
    %cst = arith.constant 2.000000e+00 : f32
    %7 = vector.broadcast %cst : f32 to vector<1x128xf32>
    %8 = arith.mulf %7, %5 : vector<1x128xf32>
    %cst_3 = arith.constant 1.500000e+01 : f32
    %9 = vector.broadcast %cst_3 : f32 to vector<1x128xf32>
    %10 = arith.divf %8, %9 : vector<1x128xf32>
    %cst_4 = arith.constant 1.000000e+00 : f32
    %11 = vector.broadcast %cst_4 : f32 to vector<1x128xf32>
    %12 = arith.subf %10, %11 : vector<1x128xf32>
    %cst_5 = arith.constant 2.000000e+00 : f32
    %13 = vector.broadcast %cst_5 : f32 to vector<1x128xf32>
    %14 = arith.mulf %13, %6 : vector<1x128xf32>
    %cst_6 = arith.constant 1.500000e+01 : f32
    %15 = vector.broadcast %cst_6 : f32 to vector<1x128xf32>
    %16 = arith.divf %14, %15 : vector<1x128xf32>
    %cst_7 = arith.constant 1.000000e+00 : f32
    %17 = vector.broadcast %cst_7 : f32 to vector<1x128xf32>
    %18 = arith.subf %16, %17 : vector<1x128xf32>
    %cst_8 = arith.constant 1.000000e+00 : f32
    %19 = vector.broadcast %cst_8 : f32 to vector<1x128xf32>
    %20 = arith.addf %12, %19 : vector<1x128xf32>
    %cst_9 = arith.constant 1.600000e+01 : f32
    %21 = vector.broadcast %cst_9 : f32 to vector<1x128xf32>
    %22 = arith.mulf %20, %21 : vector<1x128xf32>
    %cst_10 = arith.constant 1.000000e+00 : f32
    %23 = vector.broadcast %cst_10 : f32 to vector<1x128xf32>
    %24 = arith.subf %22, %23 : vector<1x128xf32>
    %cst_11 = arith.constant 5.000000e-01 : f32
    %25 = vector.broadcast %cst_11 : f32 to vector<1x128xf32>
    %26 = arith.mulf %24, %25 : vector<1x128xf32>
    %cst_12 = arith.constant 1.000000e+00 : f32
    %27 = vector.broadcast %cst_12 : f32 to vector<1x128xf32>
    %28 = arith.addf %18, %27 : vector<1x128xf32>
    %cst_13 = arith.constant 1.600000e+01 : f32
    %29 = vector.broadcast %cst_13 : f32 to vector<1x128xf32>
    %30 = arith.mulf %28, %29 : vector<1x128xf32>
    %cst_14 = arith.constant 1.000000e+00 : f32
    %31 = vector.broadcast %cst_14 : f32 to vector<1x128xf32>
    %32 = arith.subf %30, %31 : vector<1x128xf32>
    %cst_15 = arith.constant 5.000000e-01 : f32
    %33 = vector.broadcast %cst_15 : f32 to vector<1x128xf32>
    %34 = arith.mulf %32, %33 : vector<1x128xf32>
    %35 = tpu.iota {dimensions = array<i32: 0>} : vector<16x128xi32>
    %36 = arith.sitofp %35 : vector<16x128xi32> to vector<16x128xf32>
    %37 = vector.broadcast %34 : vector<1x128xf32> to vector<16x128xf32>
    %38 = arith.subf %36, %37 : vector<16x128xf32>
    %39 = math.absf %38 : vector<16x128xf32>
    %cst_16 = arith.constant 1.000000e+00 : f32
    %40 = vector.broadcast %cst_16 : f32 to vector<16x128xf32>
    %41 = arith.cmpf olt, %39, %40 : vector<16x128xf32>
    %cst_17 = arith.constant 1.250000e+00 : f32
    %42 = vector.broadcast %cst_17 : f32 to vector<16x128xf32>
    %43 = arith.mulf %42, %39 : vector<16x128xf32>
    %cst_18 = arith.constant 2.250000e+00 : f32
    %44 = vector.broadcast %cst_18 : f32 to vector<16x128xf32>
    %45 = arith.subf %43, %44 : vector<16x128xf32>
    %46 = arith.mulf %45, %39 : vector<16x128xf32>
    %47 = arith.mulf %46, %39 : vector<16x128xf32>
    %cst_19 = arith.constant 1.000000e+00 : f32
    %48 = vector.broadcast %cst_19 : f32 to vector<16x128xf32>
    %49 = arith.addf %47, %48 : vector<16x128xf32>
    %cst_20 = arith.constant 2.000000e+00 : f32
    %50 = vector.broadcast %cst_20 : f32 to vector<16x128xf32>
    %51 = arith.cmpf olt, %39, %50 : vector<16x128xf32>
    %cst_21 = arith.constant -7.500000e-01 : f32
    %52 = vector.broadcast %cst_21 : f32 to vector<16x128xf32>
    %53 = arith.mulf %52, %39 : vector<16x128xf32>
    %cst_22 = arith.constant -3.750000e+00 : f32
    %54 = vector.broadcast %cst_22 : f32 to vector<16x128xf32>
    %55 = arith.subf %53, %54 : vector<16x128xf32>
    %56 = arith.mulf %55, %39 : vector<16x128xf32>
    %cst_23 = arith.constant -6.000000e+00 : f32
    %57 = vector.broadcast %cst_23 : f32 to vector<16x128xf32>
    %58 = arith.addf %56, %57 : vector<16x128xf32>
    %59 = arith.mulf %58, %39 : vector<16x128xf32>
    %cst_24 = arith.constant -3.000000e+00 : f32
    %60 = vector.broadcast %cst_24 : f32 to vector<16x128xf32>
    %61 = arith.subf %59, %60 : vector<16x128xf32>
    %cst_25 = arith.constant 0.000000e+00 : f32
    %62 = vector.broadcast %cst_25 : f32 to vector<16x128xf32>
    %63 = arith.select %51, %61, %62 : vector<16x128xi1>, vector<16x128xf32>
    %64 = arith.select %41, %49, %63 : vector<16x128xi1>, vector<16x128xf32>
    %65 = tpu.iota {dimensions = array<i32: 0>} : vector<16x128xi32>
    %66 = arith.sitofp %65 : vector<16x128xi32> to vector<16x128xf32>
    %67 = vector.broadcast %26 : vector<1x128xf32> to vector<16x128xf32>
    %68 = arith.subf %66, %67 : vector<16x128xf32>
    %69 = math.absf %68 : vector<16x128xf32>
    %cst_26 = arith.constant 1.000000e+00 : f32
    %70 = vector.broadcast %cst_26 : f32 to vector<16x128xf32>
    %71 = arith.cmpf olt, %69, %70 : vector<16x128xf32>
    %cst_27 = arith.constant 1.250000e+00 : f32
    %72 = vector.broadcast %cst_27 : f32 to vector<16x128xf32>
    %73 = arith.mulf %72, %69 : vector<16x128xf32>
    %cst_28 = arith.constant 2.250000e+00 : f32
    %74 = vector.broadcast %cst_28 : f32 to vector<16x128xf32>
    %75 = arith.subf %73, %74 : vector<16x128xf32>
    %76 = arith.mulf %75, %69 : vector<16x128xf32>
    %77 = arith.mulf %76, %69 : vector<16x128xf32>
    %cst_29 = arith.constant 1.000000e+00 : f32
    %78 = vector.broadcast %cst_29 : f32 to vector<16x128xf32>
    %79 = arith.addf %77, %78 : vector<16x128xf32>
    %cst_30 = arith.constant 2.000000e+00 : f32
    %80 = vector.broadcast %cst_30 : f32 to vector<16x128xf32>
    %81 = arith.cmpf olt, %69, %80 : vector<16x128xf32>
    %cst_31 = arith.constant -7.500000e-01 : f32
    %82 = vector.broadcast %cst_31 : f32 to vector<16x128xf32>
    %83 = arith.mulf %82, %69 : vector<16x128xf32>
    %cst_32 = arith.constant -3.750000e+00 : f32
    %84 = vector.broadcast %cst_32 : f32 to vector<16x128xf32>
    %85 = arith.subf %83, %84 : vector<16x128xf32>
    %86 = arith.mulf %85, %69 : vector<16x128xf32>
    %cst_33 = arith.constant -6.000000e+00 : f32
    %87 = vector.broadcast %cst_33 : f32 to vector<16x128xf32>
    %88 = arith.addf %86, %87 : vector<16x128xf32>
    %89 = arith.mulf %88, %69 : vector<16x128xf32>
    %cst_34 = arith.constant -3.000000e+00 : f32
    %90 = vector.broadcast %cst_34 : f32 to vector<16x128xf32>
    %91 = arith.subf %89, %90 : vector<16x128xf32>
    %cst_35 = arith.constant 0.000000e+00 : f32
    %92 = vector.broadcast %cst_35 : f32 to vector<16x128xf32>
    %93 = arith.select %81, %91, %92 : vector<16x128xi1>, vector<16x128xf32>
    %94 = arith.select %71, %79, %93 : vector<16x128xi1>, vector<16x128xf32>
    %95 = vector.shape_cast %64 : vector<16x128xf32> to vector<16x1x128xf32>
    %96 = vector.shape_cast %94 : vector<16x128xf32> to vector<1x16x128xf32>
    %97 = vector.broadcast %95 : vector<16x1x128xf32> to vector<16x16x128xf32>
    %98 = vector.broadcast %96 : vector<1x16x128xf32> to vector<16x16x128xf32>
    %99 = arith.mulf %97, %98 : vector<16x16x128xf32>
    %100 = vector.shape_cast %99 : vector<16x16x128xf32> to vector<256x128xf32>
    %101 = arith.truncf %100 : vector<256x128xf32> to vector<256x128xbf16>
    %c0_36 = arith.constant 0 : index
    %c0_37 = arith.constant 0 : index
    %102 = vector.load %arg5[%c0_36, %c0_37] : memref<32x256xbf16, #tpu.memory_space<vmem>>, vector<32x256xbf16>
    %cst_38 = arith.constant dense<0.000000e+00> : vector<32x128xf32>
    %103 = tpu.matmul %102, %101, %cst_38 {dimension_numbers = #tpu.dot_dimension_numbers<[1], [0], [0], [1], [0, 0, 1, 1], [], []>} : vector<32x256xbf16>, vector<256x128xbf16>, vector<32x128xf32> -> vector<32x128xf32>
    %c0_39 = arith.constant 0 : index
    %c0_40 = arith.constant 0 : index
    %c0_41 = arith.constant 0 : index
    %104 = vector.load %arg4[%c0_39, %c0_40, %c0_41] : memref<1x32x128xf32, #tpu.memory_space<vmem>>, vector<1x32x128xf32>
    %105 = vector.shape_cast %104 : vector<1x32x128xf32> to vector<32x128xf32>
    %106 = vector.shape_cast %103 : vector<32x128xf32> to vector<1x32x128xf32>
    tpu.vector_store %arg4[%c0_39, %c0_40, %c0_41], %106 {strides = array<i32>} : memref<1x32x128xf32, #tpu.memory_space<vmem>>, vector<1x32x128xf32>,
    return
  }
  func.func @transform_0(%arg0: i32, %arg1: i32) -> (i32, i32, i32) {
    %c0_i32 = arith.constant 0 : i32
    %c0_i32_0 = arith.constant 0 : i32
    return %arg0, %c0_i32, %arg1 : i32, i32, i32
  }
  func.func @transform_2(%arg0: i32, %arg1: i32) -> (i32, i32, i32) {
    %c0_i32 = arith.constant 0 : i32
    %c0_i32_0 = arith.constant 0 : i32
    return %arg0, %c0_i32, %arg1 : i32, i32, i32
  }
}

</mosaic_0001>

<llo_original>
// kernel: tpu_custom_call.1
$region0: #{tpu_custom_call.1}
  #allocation0 [shape = 'u32[]', space=smem, size = 0x4, offset = 0x4, fixed_abs, tag = 'smem constant byte address 0x4 - core index']
  #allocation1 [shape = 'u32[144,128]{1,0:T(1,128)}', space=vmem, size = 0x12000, scoped, tag = 'internal scratch']
  #allocation2 [shape = 'bf16[32,256]{1,0:T(16,128)(2,1)}', space=vmem, size = 0x4000, scoped, tag = 'scratch operand']
  #allocation3 [shape = 's32[1]{0}', space=sflag, size = 0x4, scoped, tag = 'scratch operand']
  #allocation8 [shape = 's32[]', space=sflag, size = 0x4, offset = 0, fixed_abs, tag = 'sflag constant byte address 0x0 - dummy sync flag']
  %s0 = inlined_call_operand.hbm [shape: f32[2,2,128], index: 0, kind: input, shape index: {}]
  %s1 = inlined_call_operand.hbm [shape: bf16[2,32,256], index: 1, kind: input, shape index: {}]
  %s2 = inlined_call_operand.hbm [shape: f32[2,32,128], index: 2, kind: output, shape index: {}]
  %s3 = sld [smem:[#allocation0]]
  $region45: #{tpu_custom_call.1} parent=0
    _
  %s5 = ssub.s32 1, %s3
  %s6 = scalar_select 0, %s5, %s3
  $region1: #{tpu_custom_call.1} parent=0
    #allocation4 [shape = 'u8[2048]{0}', space=vmem, size = 0x800, scoped, tag = 'input window, operand 0']
    #allocation5 [shape = 's32[2]{0}', space=sflag, size = 0x8, scoped, tag = 'scoped memory for tpu_custom_call.1']
    #allocation6 [shape = 's32[2]{0}', space=sflag, size = 0x8, scoped, tag = 'scoped memory for tpu_custom_call.1']
    #allocation7 [shape = 'u8[32768]{0}', space=vmem, size = 0x8000, scoped, tag = 'output window, operand 0']
    %7 = vsyncpa [#allocation5], 0
    %s8 = scalar_lea.sflag [#allocation5], 1
    %9 = vsyncpa %s8, 0
    %10 = vsyncpa [#allocation6], 0
    %s11 = scalar_lea.sflag [#allocation6], 1
    %12 = vsyncpa %s11, 0
    loop: start=0, step=1, limit=4
    $region2: #{tpu_custom_call.1} parent=1 // loop_pre_header
      _
    $region3: #{tpu_custom_call.1} parent=1 // loop_header
      %s14 = sphi 0, %s18
      %p15 = scmp.ge.s32.totalorder %s14, 4
      %s21 = sphi 0, %s33
      %s22 = sphi 0, %s29
      %s23 = sphi 0, %s21
      %s24 = sphi 0, %s22
      %s25 = sphi 0, %s23
      %s26 = sphi 0, %s24
      %s38 = sphi 0, %s40
      %s41 = sphi 0, %s38
      %s42 = sphi 0, %s41
      %s58 = sphi 0, %s42
      %s66 = sphi 0, %s68
      %s69 = sphi 0, %s66
      %s70 = sphi 0, %s69
      %s86 = sphi 0, %s70
    $region4: #{tpu_custom_call.1} parent=1 // loop_header_branch
      %17 = sbr.rel (%p15) target = $region8
    $region5: #{tpu_custom_call.1} parent=1 // loop_body
      %s19 = ssub.s32 %s14, 1
      %s20 = ssub.s32 %s14, 2
      %s27 = sadd.s32 1, %s22
      %p28 = scmp.ge.s32.totalorder %s27, 1
      %s29 = scalar_select %p28, 0, %s27
      %s30 = sadd.s32 1, %s21
      %s31 = scalar_select %p28, %s30, %s21
      %p32 = scmp.ge.s32.totalorder %s31, 2
      %s33 = scalar_select %p32, 0, %s31
      %s34 = ssub.s32 %s21, %s33
      %s35 = ssub.s32 %s22, %s29
      %s36 = sor.u32 %s34, %s35
      %p37 = scmp.eq.s32.totalorder %s36, 0
      %s39 = sadd.s32 %s38, 1
      %s40 = scalar_select %p37, %s38, %s39
      %p43 = pneg %p37
      %p44 = scmp.eq.s32.totalorder %s14, 1
      %p45 = por %p43, %p44
      %p46 = scmp.ne.s32.totalorder %s38, %s41
      %p47 = scmp.eq.s32.totalorder %s14, 0
      %p48 = por %p46, %p47
      %p49 = scmp.ne.s32.totalorder %s38, %s41
      %p50 = scmp.eq.s32.totalorder %s19, 1
      %p51 = por %p49, %p50
      %p52 = scmp.ne.s32.totalorder %s41, %s42
      %p53 = scmp.eq.s32.totalorder %s19, 0
      %p54 = por %p52, %p53
      %p55 = scmp.ne.s32.totalorder %s41, %s42
      %p56 = scmp.eq.s32.totalorder %s20, 1
      %p57 = por %p55, %p56
      %p59 = scmp.ne.s32.totalorder %s42, %s58
      %p60 = scmp.eq.s32.totalorder %s20, 0
      %p61 = por %p59, %p60
      %s62 = ssub.s32 %s21, %s33
      %s63 = ssub.s32 %s22, %s29
      %s64 = sor.u32 %s62, %s63
      %p65 = scmp.eq.s32.totalorder %s64, 0
      %s67 = sadd.s32 %s66, 1
      %s68 = scalar_select %p65, %s66, %s67
      %p71 = pneg %p65
      %p72 = scmp.eq.s32.totalorder %s14, 1
      %p73 = por %p71, %p72
      %p74 = scmp.ne.s32.totalorder %s66, %s69
      %p75 = scmp.eq.s32.totalorder %s14, 0
      %p76 = por %p74, %p75
      %p77 = scmp.ne.s32.totalorder %s66, %s69
      %p78 = scmp.eq.s32.totalorder %s19, 1
      %p79 = por %p77, %p78
      %p80 = scmp.ne.s32.totalorder %s69, %s70
      %p81 = scmp.eq.s32.totalorder %s19, 0
      %p82 = por %p80, %p81
      %p83 = scmp.ne.s32.totalorder %s69, %s70
      %p84 = scmp.eq.s32.totalorder %s20, 1
      %p85 = por %p83, %p84
      %p87 = scmp.ne.s32.totalorder %s70, %s86
      %p88 = scmp.eq.s32.totalorder %s20, 0
      %p89 = por %p87, %p88
      %p90 = scmp.le.s32.totalorder 1, %s14
      %p91 = scmp.lt.s32.totalorder %s14, 3
      %p92 = pnand %p90, %p91
      %p93 = pneg %p92
      // Predicated region
      $region9: #{tpu_custom_call.1} parent=5 // pred_check
        _
      $region10: #{tpu_custom_call.1} parent=5 // pred_check_branch
        %95 = sbr.rel (%p92) target = $region12
      $region11: #{tpu_custom_call.1} parent=5 // pred_region
        %s96 = ssub.s32 %s14, 1
      $region12: #{tpu_custom_call.1} parent=5 // pred_fallthru
        _
      %p97 = scmp.lt.s32.totalorder %s14, 2
      // Predicated region
      $region13: #{tpu_custom_call.1} parent=5 // pred_check
        %p98 = pneg %p97
      $region14: #{tpu_custom_call.1} parent=5 // pred_check_branch
        %100 = sbr.rel (%p98) target = $region16
      $region15: #{tpu_custom_call.1} parent=5 // pred_region
        // Predicated region
        $region17: #{tpu_custom_call.1} parent=15 // pred_check
          %p101 = pneg %p48
        $region18: #{tpu_custom_call.1} parent=15 // pred_check_branch
          %103 = sbr.rel (%p101) target = $region20
        $region19: #{tpu_custom_call.1} parent=15 // pred_region
          %s104 = sand.u32 %s38, 1
          %s105 = scalar_lea.sflag [#allocation5], %s104
          %s106 = sand.u32 %s38, 1
          %s107 = smul.addr %s106, 2
          %s108 = scalar_lea.vmem [#allocation4], %s107
          %s110 = ssub.s32 32, 32
          %111 = vsyncadd %s105, %s110
          %s112 = sadd.s32 %s22, %s21
          %s113 = smul.addr %s112, 32
          %s114 = scalar_lea.hbm %s0, %s113
          %s116 = sshll.u32 %s108, 4
          %s117 = int_to_ptr.vmem [resolvable:$true] %s116
          %119 = dma.hbm_to_vmem [thread:$0]  %s114, 32, %s117, %s105
        $region20: #{tpu_custom_call.1} parent=15 // pred_fallthru
          _
      $region16: #{tpu_custom_call.1} parent=5 // pred_fallthru
        _
      %p120 = scmp.le.s32.totalorder 1, %s14
      %p121 = scmp.lt.s32.totalorder %s14, 3
      %p122 = pnand %p120, %p121
      %p123 = pneg %p122
      // Predicated region
      $region21: #{tpu_custom_call.1} parent=5 // pred_check
        _
      $region22: #{tpu_custom_call.1} parent=5 // pred_check_branch
        %125 = sbr.rel (%p122) target = $region24
      $region23: #{tpu_custom_call.1} parent=5 // pred_region
        %s126 = ssub.s32 %s14, 1
        %s127 = sand.u32 %s41, 1
        %s128 = scalar_lea.sflag [#allocation5], %s127
        %s129 = sand.u32 %s41, 1
        %s130 = smul.addr %s129, 2
        %s131 = scalar_lea.vmem [#allocation4], %s130
        // Predicated region
        $region25: #{tpu_custom_call.1} parent=23 // pred_check
          %p132 = pneg %p54
        $region26: #{tpu_custom_call.1} parent=23 // pred_check_branch
          %134 = sbr.rel (%p132) target = $region28
        $region27: #{tpu_custom_call.1} parent=23 // pred_region
          %135 = dma.done %s128, 32
        $region28: #{tpu_custom_call.1} parent=23 // pred_fallthru
          _
        %s136 = sand.u32 %s41, 1
        %s137 = scalar_lea.sflag [#allocation5], %s136
        %s138 = sand.u32 %s41, 1
        %s139 = smul.addr %s138, 2
        %s140 = scalar_lea.vmem [#allocation4], %s139
        %p141 = pneg %p54
        %p142 = pneg %p51
        %p143 = pneg %p82
        %p144 = pneg %p79
        %s145 = sand.u32 %s69, 1
        %s146 = scalar_lea.sflag [#allocation6], %s145
        %s147 = sand.u32 %s69, 1
        %s148 = smul.addr %s147, 32
        %s149 = scalar_lea.vmem [#allocation7], %s148
        %p151 = scmp.eq.s32.totalorder %s24, 0
        // Predicated region
        $region29: #{tpu_custom_call.1} parent=23 // pred_check
          %p152 = pneg %p151
        $region30: #{tpu_custom_call.1} parent=23 // pred_check_branch
          %154 = sbr.rel (%p152) target = $region32
        $region31: #{tpu_custom_call.1} parent=23 // pred_region
          #allocation9 [shape = 'u32[9]{0}', space=smem, size = 0x24, scoped, tag = 'DMA stride descriptor']
          %s155 = smul.u32 %s23, 8
          %s156 = smul.addr %s155, 64
          %s157 = scalar_lea.hbm %s1, %s156
          %s159 = sshll.u32 1, 14
          %s160 = sxor.u32 4294967295, %s159
          %s162 = sld [smem:[#allocation0]]
          %s163 = sadd.s32 2, %s162
          %s165 = sshll.u32 7, 26
          %s166 = sxor.u32 4294967295, %s165
          %s167 = sand.u32 0, %s166
          %s168 = sshll.u32 %s163, 26
          %s169 = sor.u32 %s167, %s168
          %s170 = sshll.u32 [#allocation2], 4
          %s171 = int_to_ptr.vmem [resolvable:$true] %s170
          %174 = sst [smem:[#allocation9]] 256
          %s175 = scalar_lea.smem [#allocation9], 1
          %176 = sst [smem:[%s175]] 256
          %s177 = scalar_lea.smem [#allocation9], 2
          %178 = sst [smem:[%s177]] 2
          %s179 = scalar_lea.smem [#allocation9], 3
          %180 = sst [smem:[%s179]] 64
          %s181 = scalar_lea.smem [#allocation9], 4
          %182 = sst [smem:[%s181]] 128
          %s183 = scalar_lea.smem [#allocation9], 5
          %184 = sst [smem:[%s183]] 2
          %s185 = scalar_lea.smem [#allocation9], 6
          %186 = sst [smem:[%s185]] 128
          %s187 = scalar_lea.smem [#allocation9], 7
          %188 = sst [smem:[%s187]] 64
          %s189 = scalar_lea.smem [#allocation9], 8
          %190 = sst [smem:[%s189]] 4
          %192 = dma.general %s157, 512, %s171, [#allocation3], [#allocation8], [#allocation9], %s169, 0
          %s193 = smul.u32 4, 4
          %s194 = smul.u32 %s193, 2
          %s195 = sshll.u32 %s194, 4
          %196 = dma.done [#allocation3], %s195
        $region32: #{tpu_custom_call.1} parent=23 // pred_fallthru
          _
        %v197 = vld [vmem:[%s131] sm:$0x3]
        %v198 = vmul.f32 %v197, 2.0
        %v199 = vrcp.pop 15.0
        %v200 = vmul.f32 %v198, %v199
        %v201 = vsub.f32 %v200, 1.0
        %v202 = vadd.f32 %v201, 1.0
        %v203 = vmul.f32 %v202, 16.0
        %v204 = vsub.f32 %v203, 1.0
        %v205 = vmul.f32 %v204, 0.5
        %v206 = vlaneseq
        %v207 = vshrl.u32 %v206, 7
        %v208 = vadd.s32 %v207, 8
        %v209 = vcvt.s32.f32 %v207
        %v210 = vcvt.s32.f32 %v208
        %v211 = vlaneseq
        %v212 = vshrl.u32 %v211, 7
        %v213 = vsub.s32 1, %v212
        %v214 = vrot.slane %v205, %v213
        %v215 = vsub.f32 %v209, %v214
        %v216 = vsub.f32 %v210, %v214
        %v217 = vand.u32 2147483647, %v215
        %v218 = vand.u32 2147483647, %v216
        %vm219 = vcmp.lt.f32.partialorder %v217, 1.0
        %vm220 = vcmp.lt.f32.partialorder %v218, 1.0
        %v221 = vmul.f32 %v217, 1.25
        %v222 = vmul.f32 %v218, 1.25
        %v223 = vsub.f32 %v221, 2.25
        %v224 = vsub.f32 %v222, 2.25
        %v225 = vmul.f32 %v223, %v217
        %v226 = vmul.f32 %v224, %v218
        %v227 = vmul.f32 %v225, %v217
        %v228 = vmul.f32 %v226, %v218
        %v229 = vadd.f32 %v227, 1.0
        %v230 = vadd.f32 %v228, 1.0
        %vm231 = vcmp.lt.f32.partialorder %v217, 2.0
        %vm232 = vcmp.lt.f32.partialorder %v218, 2.0
        %v233 = vmul.f32 %v217, -0.75
        %v234 = vmul.f32 %v218, -0.75
        %v235 = vsub.f32 %v233, -3.75
        %v236 = vsub.f32 %v234, -3.75
        %v237 = vmul.f32 %v235, %v217
        %v238 = vmul.f32 %v236, %v218
        %v239 = vadd.f32 %v237, -6.0
        %v240 = vadd.f32 %v238, -6.0
        %v241 = vmul.f32 %v239, %v217
        %v242 = vmul.f32 %v240, %v218
        %v243 = vsub.f32 %v241, -3.0
        %v244 = vsub.f32 %v242, -3.0
        %v245 = vsel %vm231, %v243, 0.0
        %v246 = vsel %vm232, %v244, 0.0
        %v247 = vsel %vm219, %v229, %v245
        %v248 = vsel %vm220, %v230, %v246
        %v249 = vlaneseq
        %v250 = vshrl.u32 %v249, 7
        %v251 = vsub.s32 0, %v250
        %v252 = vrot.slane %v205, %v251
        %v253 = vsub.f32 %v209, %v252
        %v254 = vsub.f32 %v210, %v252
        %v255 = vand.u32 2147483647, %v253
        %v256 = vand.u32 2147483647, %v254
        %vm257 = vcmp.lt.f32.partialorder %v255, 1.0
        %vm258 = vcmp.lt.f32.partialorder %v256, 1.0
        %v259 = vmul.f32 %v255, 1.25
        %v260 = vmul.f32 %v256, 1.25
        %v261 = vsub.f32 %v259, 2.25
        %v262 = vsub.f32 %v260, 2.25
        %v263 = vmul.f32 %v261, %v255
        %v264 = vmul.f32 %v262, %v256
        %v265 = vmul.f32 %v263, %v255
        %v266 = vmul.f32 %v264, %v256
        %v267 = vadd.f32 %v265, 1.0
        %v268 = vadd.f32 %v266, 1.0
        %vm269 = vcmp.lt.f32.partialorder %v255, 2.0
        %vm270 = vcmp.lt.f32.partialorder %v256, 2.0
        %v271 = vmul.f32 %v255, -0.75
        %v272 = vmul.f32 %v256, -0.75
        %v273 = vsub.f32 %v271, -3.75
        %v274 = vsub.f32 %v272, -3.75
        %v275 = vmul.f32 %v273, %v255
        %v276 = vmul.f32 %v274, %v256
        %v277 = vadd.f32 %v275, -6.0
        %v278 = vadd.f32 %v276, -6.0
        %v279 = vmul.f32 %v277, %v255
        %v280 = vmul.f32 %v278, %v256
        %v281 = vsub.f32 %v279, -3.0
        %v282 = vsub.f32 %v280, -3.0
        %v283 = vsel %vm269, %v281, 0.0
        %v284 = vsel %vm270, %v282, 0.0
        %v285 = vsel %vm257, %v267, %v283
        %v286 = vsel %vm258, %v268, %v284
        %v289 = vcombine.high %v247, %v247
        %v291 = vunpack.c.l.s4 1966171168
        %v292 = vunpack.c.0.s8 %v291
        %v293 = vlaneseq
        %v294 = vshrl.u32 %v293, 7
        %v295 = vsub.s32 %v292, %v294
        %v296 = vrot.slane %v247, %v295
        %v298 = vunpack.c.l.s4 1966171168
        %v299 = vunpack.c.0.s8 %v298
        %v300 = vlaneseq
        %v301 = vshrl.u32 %v300, 7
        %v302 = vsub.s32 %v299, %v301
        %v303 = vrot.slane %v289, %v302
        %v304 = vcombine.high %v296, %v296
        %v305 = vcombine.high %v303, %v303
        %v307 = vunpack.c.l.s4 1966171168
        %v308 = vunpack.c.0.s8 %v307
        %v309 = vlaneseq
        %v310 = vshrl.u32 %v309, 7
        %v311 = vsub.s32 %v308, %v310
        %v312 = vrot.slane %v296, %v311
        %v314 = vunpack.c.l.s4 1966171168
        %v315 = vunpack.c.0.s8 %v314
        %v316 = vlaneseq
        %v317 = vshrl.u32 %v316, 7
        %v318 = vsub.s32 %v315, %v317
        %v319 = vrot.slane %v303, %v318
        %v321 = vunpack.c.l.s4 1966171168
        %v322 = vunpack.c.0.s8 %v321
        %v323 = vlaneseq
        %v324 = vshrl.u32 %v323, 7
        %v325 = vsub.s32 %v322, %v324
        %v326 = vrot.slane %v304, %v325
        %v328 = vunpack.c.l.s4 1966171168
        %v329 = vunpack.c.0.s8 %v328
        %v330 = vlaneseq
        %v331 = vshrl.u32 %v330, 7
        %v332 = vsub.s32 %v329, %v331
        %v333 = vrot.slane %v305, %v332
        %v334 = vcombine.high %v312, %v312
        %v335 = vcombine.high %v319, %v319
        %v336 = vcombine.high %v326, %v326
        %v337 = vcombine.high %v333, %v333
        %v338 = vcombine.high %v248, %v248
        %v340 = vunpack.c.l.s4 1966171168
        %v341 = vunpack.c.0.s8 %v340
        %v342 = vlaneseq
        %v343 = vshrl.u32 %v342, 7
        %v344 = vsub.s32 %v341, %v343
        %v345 = vrot.slane %v248, %v344
        %v347 = vunpack.c.l.s4 1966171168
        %v348 = vunpack.c.0.s8 %v347
        %v349 = vlaneseq
        %v350 = vshrl.u32 %v349, 7
        %v351 = vsub.s32 %v348, %v350
        %v352 = vrot.slane %v338, %v351
        %v353 = vcombine.high %v345, %v345
        %v354 = vcombine.high %v352, %v352
        %v356 = vunpack.c.l.s4 1966171168
        %v357 = vunpack.c.0.s8 %v356
        %v358 = vlaneseq
        %v359 = vshrl.u32 %v358, 7
        %v360 = vsub.s32 %v357, %v359
        %v361 = vrot.slane %v345, %v360
        %v363 = vunpack.c.l.s4 1966171168
        %v364 = vunpack.c.0.s8 %v363
        %v365 = vlaneseq
        %v366 = vshrl.u32 %v365, 7
        %v367 = vsub.s32 %v364, %v366
        %v368 = vrot.slane %v352, %v367
        %v370 = vunpack.c.l.s4 1966171168
        %v371 = vunpack.c.0.s8 %v370
        %v372 = vlaneseq
        %v373 = vshrl.u32 %v372, 7
        %v374 = vsub.s32 %v371, %v373
        %v375 = vrot.slane %v353, %v374
        %v377 = vunpack.c.l.s4 1966171168
        %v378 = vunpack.c.0.s8 %v377
        %v379 = vlaneseq
        %v380 = vshrl.u32 %v379, 7
        %v381 = vsub.s32 %v378, %v380
        %v382 = vrot.slane %v354, %v381
        %v383 = vcombine.high %v361, %v361
        %v384 = vcombine.high %v368, %v368
        %v385 = vcombine.high %v375, %v375
        %v386 = vcombine.high %v382, %v382
        %v387 = vlaneseq
        %v388 = vshrl.u32 %v387, 7
        %v389 = vsub.s32 0, %v388
        %v390 = vrot.slane %v312, %v389
        %v391 = vlaneseq
        %v392 = vshrl.u32 %v391, 7
        %v393 = vsub.s32 0, %v392
        %v394 = vrot.slane %v326, %v393
        %v395 = vlaneseq
        %v396 = vshrl.u32 %v395, 7
        %v397 = vsub.s32 0, %v396
        %v398 = vrot.slane %v334, %v397
        %v399 = vlaneseq
        %v400 = vshrl.u32 %v399, 7
        %v401 = vsub.s32 0, %v400
        %v402 = vrot.slane %v336, %v401
        %v403 = vlaneseq
        %v404 = vshrl.u32 %v403, 7
        %v405 = vsub.s32 0, %v404
        %v406 = vrot.slane %v319, %v405
        %v407 = vlaneseq
        %v408 = vshrl.u32 %v407, 7
        %v409 = vsub.s32 0, %v408
        %v410 = vrot.slane %v333, %v409
        %v411 = vlaneseq
        %v412 = vshrl.u32 %v411, 7
        %v413 = vsub.s32 0, %v412
        %v414 = vrot.slane %v335, %v413
        %v415 = vlaneseq
        %v416 = vshrl.u32 %v415, 7
        %v417 = vsub.s32 0, %v416
        %v418 = vrot.slane %v337, %v417
        %v419 = vlaneseq
        %v420 = vshrl.u32 %v419, 7
        %v421 = vsub.s32 0, %v420
        %v422 = vrot.slane %v361, %v421
        %v423 = vlaneseq
        %v424 = vshrl.u32 %v423, 7
        %v425 = vsub.s32 0, %v424
        %v426 = vrot.slane %v375, %v425
        %v427 = vlaneseq
        %v428 = vshrl.u32 %v427, 7
        %v429 = vsub.s32 0, %v428
        %v430 = vrot.slane %v383, %v429
        %v431 = vlaneseq
        %v432 = vshrl.u32 %v431, 7
        %v433 = vsub.s32 0, %v432
        %v434 = vrot.slane %v385, %v433
        %v435 = vlaneseq
        %v436 = vshrl.u32 %v435, 7
        %v437 = vsub.s32 0, %v436
        %v438 = vrot.slane %v368, %v437
        %v439 = vlaneseq
        %v440 = vshrl.u32 %v439, 7
        %v441 = vsub.s32 0, %v440
        %v442 = vrot.slane %v382, %v441
        %v443 = vlaneseq
        %v444 = vshrl.u32 %v443, 7
        %v445 = vsub.s32 0, %v444
        %v446 = vrot.slane %v384, %v445
        %v447 = vlaneseq
        %v448 = vshrl.u32 %v447, 7
        %v449 = vsub.s32 0, %v448
        %v450 = vrot.slane %v386, %v449
        %v467 = vmul.f32 %v390, %v285
        %v468 = vmul.f32 %v390, %v286
        %v469 = vmul.f32 %v394, %v285
        %v470 = vmul.f32 %v394, %v286
        %v471 = vmul.f32 %v398, %v285
        %v472 = vmul.f32 %v398, %v286
        %v473 = vmul.f32 %v402, %v285
        %v474 = vmul.f32 %v402, %v286
        %v475 = vmul.f32 %v406, %v285
        %v476 = vmul.f32 %v406, %v286
        %v477 = vmul.f32 %v410, %v285
        %v478 = vmul.f32 %v410, %v286
        %v479 = vmul.f32 %v414, %v285
        %v480 = vmul.f32 %v414, %v286
        %v481 = vmul.f32 %v418, %v285
        %v482 = vmul.f32 %v418, %v286
        %v483 = vmul.f32 %v422, %v285
        %v484 = vmul.f32 %v422, %v286
        %v485 = vmul.f32 %v426, %v285
        %v486 = vmul.f32 %v426, %v286
        %v487 = vmul.f32 %v430, %v285
        %v488 = vmul.f32 %v430, %v286
        %v489 = vmul.f32 %v434, %v285
        %v490 = vmul.f32 %v434, %v286
        %v491 = vmul.f32 %v438, %v285
        %v492 = vmul.f32 %v438, %v286
        %v493 = vmul.f32 %v442, %v285
        %v494 = vmul.f32 %v442, %v286
        %v495 = vmul.f32 %v446, %v285
        %v496 = vmul.f32 %v446, %v286
        %v497 = vmul.f32 %v450, %v285
        %v498 = vmul.f32 %v450, %v286
        %v499 = vpack.c.bf16 %v468, %v467
        %v500 = vpack.c.bf16 %v470, %v469
        %v501 = vpack.c.bf16 %v472, %v471
        %v502 = vpack.c.bf16 %v474, %v473
        %v503 = vpack.c.bf16 %v476, %v475
        %v504 = vpack.c.bf16 %v478, %v477
        %v505 = vpack.c.bf16 %v480, %v479
        %v506 = vpack.c.bf16 %v482, %v481
        %v507 = vpack.c.bf16 %v484, %v483
        %v508 = vpack.c.bf16 %v486, %v485
        %v509 = vpack.c.bf16 %v488, %v487
        %v510 = vpack.c.bf16 %v490, %v489
        %v511 = vpack.c.bf16 %v492, %v491
        %v512 = vpack.c.bf16 %v494, %v493
        %v513 = vpack.c.bf16 %v496, %v495
        %v514 = vpack.c.bf16 %v498, %v497
        %v515 = vld [vmem:[#allocation2] sm:$0xff]
        %v516 = vld [vmem:[#allocation2 + $0x8] sm:$0xff]
        %v517 = vld [vmem:[#allocation2 + $0x10] sm:$0xff]
        %v518 = vld [vmem:[#allocation2 + $0x18] sm:$0xff]
        %519 = vmatprep.subr.bf16.mxu0 0
        %520 = vmatpush1.bf16.msra.mxu0 %v499
        %521 = vmatprep.subr.bf16.mxu0 0
        %522 = vmatpush1.bf16.msra.mxu0 %v500
        %523 = vmatprep.subr.bf16.mxu0 0
        %524 = vmatpush1.bf16.msra.mxu0 %v501
        %525 = vmatprep.subr.bf16.mxu0 0
        %526 = vmatpush1.bf16.msra.mxu0 %v502
        %527 = vmatprep.subr.bf16.mxu0 0
        %528 = vmatpush1.bf16.msra.mxu0 %v503
        %529 = vmatprep.subr.bf16.mxu0 0
        %530 = vmatpush1.bf16.msra.mxu0 %v504
        %531 = vmatprep.subr.bf16.mxu0 0
        %532 = vmatpush1.bf16.msra.mxu0 %v505
        %533 = vmatprep.subr.bf16.mxu0 0
        %534 = vmatpush1.bf16.msra.mxu0 %v506
        %535 = vmatprep.subr.bf16.mxu0 0
        %536 = vmatpush1.bf16.msra.mxu0 %v507
        %537 = vmatprep.subr.bf16.mxu0 0
        %538 = vmatpush1.bf16.msra.mxu0 %v508
        %539 = vmatprep.subr.bf16.mxu0 0
        %540 = vmatpush1.bf16.msra.mxu0 %v509
        %541 = vmatprep.subr.bf16.mxu0 0
        %542 = vmatpush1.bf16.msra.mxu0 %v510
        %543 = vmatprep.subr.bf16.mxu0 0
        %544 = vmatpush1.bf16.msra.mxu0 %v511
        %545 = vmatprep.subr.bf16.mxu0 0
        %546 = vmatpush1.bf16.msra.mxu0 %v512
        %547 = vmatprep.subr.bf16.mxu0 0
        %548 = vmatpush1.bf16.msra.mxu0 %v513
        %549 = vmatprep.subr.bf16.mxu0 0
        %550 = vmatpush1.bf16.msra.mxu0 %v514
        %551 = vmatprep.mubr.bf16.mxu0 %v516
        %552 = vmatmul.mubr.bf16.gmra.mrb[0].mxu0 %v515
        %v553 = vpop.f32.mrb[0].mxu0
        %v554 = vadd.f32 0.0, %v553
        %v555 = vpop.f32.mrb[0].mxu0
        %v556 = vpop.f32.mrb[0].mxu0
        %v557 = vadd.f32 0.0, %v556
        %v558 = vpop.f32.mrb[0].mxu0
        %559 = vmatprep.mubr.bf16.mxu0 %v518
        %560 = vmatmul.mubr.bf16.gmra.mrb[0].mxu0 %v517
        %v561 = vpop.f32.mrb[0].mxu0
        %v562 = vadd.f32 0.0, %v561
        %v563 = vpop.f32.mrb[0].mxu0
        %v564 = vpop.f32.mrb[0].mxu0
        %v565 = vadd.f32 0.0, %v564
        %v566 = vpop.f32.mrb[0].mxu0
        %567 = vdwg.mxu0
        %568 = vst [vmem:[%s149] sm:$0xff] %v554
        %569 = vst [vmem:[%s149 + $0x8] sm:$0xff] %v557
        %570 = vst [vmem:[%s149 + $0x10] sm:$0xff] %v562
        %571 = vst [vmem:[%s149 + $0x18] sm:$0xff] %v565
        %s572 = sand.u32 %s69, 1
        %s573 = scalar_lea.sflag [#allocation6], %s572
        %s574 = sand.u32 %s69, 1
        %s575 = smul.addr %s574, 32
        %s576 = scalar_lea.vmem [#allocation7], %s575
        // Predicated region
        $region33: #{tpu_custom_call.1} parent=23 // pred_check
          %p577 = pneg %p79
        $region34: #{tpu_custom_call.1} parent=23 // pred_check_branch
          %579 = sbr.rel (%p577) target = $region36
        $region35: #{tpu_custom_call.1} parent=23 // pred_region
          %s581 = ssub.s32 512, 512
          %582 = vsyncadd %s573, %s581
          %s583 = smul.addr %s23, 4
          %s584 = sadd.s32 %s24, %s583
          %s585 = smul.addr %s584, 128
          %s586 = scalar_lea.hbm %s2, %s585
          %s587 = sshll.u32 %s576, 4
          %s588 = int_to_ptr.vmem [resolvable:$true] %s587
          %593 = dma.vmem_to_hbm [thread:$0]  %s588, 512, %s586, %s573, 128, 128, 8
        $region36: #{tpu_custom_call.1} parent=23 // pred_fallthru
          _
      $region24: #{tpu_custom_call.1} parent=5 // pred_fallthru
        _
      %p594 = scmp.le.s32.totalorder 2, %s14
      // Predicated region
      $region37: #{tpu_custom_call.1} parent=5 // pred_check
        %p595 = pneg %p594
      $region38: #{tpu_custom_call.1} parent=5 // pred_check_branch
        %597 = sbr.rel (%p595) target = $region40
      $region39: #{tpu_custom_call.1} parent=5 // pred_region
        %s598 = ssub.s32 %s14, 2
        // Predicated region
        $region41: #{tpu_custom_call.1} parent=39 // pred_check
          %p599 = pneg %p85
        $region42: #{tpu_custom_call.1} parent=39 // pred_check_branch
          %601 = sbr.rel (%p599) target = $region44
        $region43: #{tpu_custom_call.1} parent=39 // pred_region
          %s602 = sand.u32 %s70, 1
          %s603 = scalar_lea.sflag [#allocation6], %s602
          %s604 = sand.u32 %s70, 1
          %s605 = smul.addr %s604, 32
          %s606 = scalar_lea.vmem [#allocation7], %s605
          %607 = dma.done %s603, 512
        $region44: #{tpu_custom_call.1} parent=39 // pred_fallthru
          _
      $region40: #{tpu_custom_call.1} parent=5 // pred_fallthru
        _
    $region6: #{tpu_custom_call.1} parent=1 // loop_footer
      %s18 = sadd.s32 1, %s14
    $region7: #{tpu_custom_call.1} parent=1 // loop_footer_branch
      %13 = sbr.rel target = $region3
    $region8: #{tpu_custom_call.1} parent=1 // loop_exit
      _
    %608 = vsyncpa [#allocation5], 1
    %s609 = scalar_lea.sflag [#allocation5], 1
    %610 = vsyncpa %s609, 1
    %611 = vsyncpa [#allocation6], 1
    %s612 = scalar_lea.sflag [#allocation6], 1
    %613 = vsyncpa %s612, 1
  %614 = vsyncmov [#allocation3]
  %s615 = vpop.sfrf %614
  %p616 = scmp.eq.s32.totalorder %s615, 0
  %p617 = pneg %p616
  %619 = shalt.err (%p617)

</llo_original>
